<compile_context>
chip_gen: v7x
topology: tpu7x:2x2x1
jax: 0.10.0
libtpu: 0.0.40
codegen_flags: <defaults>
</compile_context>

<pallas_src>
import numpy as np
import jax
import jax.numpy as jnp
from jax.experimental import pallas as pl
from jax.experimental.pallas import tpu as pltpu

# ----------------------------- problem sizes --------------------------------
B, H, W = 2, 8, 116                 # input (B, H, W); flatten => 112 (option_one)
BH = B * H                          # 16 rows stacked on the sublane/M axis
KH1, KW1 = 3, 10                    # conv1 kernel
KH2, KW2 = 3, 3                     # conv2 kernel
PAD = 1
STRIDE_W = 2
W1O = (W + 2 * PAD - KW1) // STRIDE_W + 1       # 55
W2O = (W1O + 2 * PAD - KW2) // STRIDE_W + 1     # 28
WP = W2O // 2                                   # 14 (maxpool (1,2))
FLAT = H * WP                                   # 112  -> Linear(112, 20)
HID, OUT = 20, 7
HW1 = H * HID                                   # 160 (wide fc1 intermediate)
EPS = 1e-5
TAP = 128                                       # 128-lane-aligned tap stride

# ---------------------- packed-aux row layout (8-aligned) --------------------
R_M1 = 0            # (W,   3*TAP)  conv1 column matrices, taps at lanes 0/128/256
R_M2 = 120          # (TAP, 3*TAP)  conv2 column matrices (rows >= 55 zero),
                    #               output columns pre-permuted to [even|odd]
R_SC = 248          # (BH,  3*BH)   combine matrix [shift-up | I | shift-down]
R_W1W = 264         # (WP,  HW1)    fc1 weight, "wide" form, BN-scaled
R_MSK = 280         # (BH,  HW1)    block-diagonal pick mask (0/1)
R_RSUM = 296        # (HW1, HID)    stack of H identity(HID) blocks
R_W2T = 456         # (HID, OUT)    fc2 weight (transposed)
R_B = 480           # 1 row: lanes [0:HID]   = fc1 bias (BN shift folded in)
                    #        lanes [TAP:TAP+OUT] = fc2 bias  (both tile-aligned)
AUX_ROWS, AUX_COLS = 488, 3 * TAP               # (488, 384) f32  ~0.72 MiB


# ------------------------------- Pallas kernel -------------------------------
def seismic_kernel(scal_ref,   # SMEM (2,)              [conv1_bias, conv2_bias]
                   x_ref,      # VMEM (BH, W)           raw input, rows = b*H + h
                   aux_ref,    # VMEM (AUX_ROWS, 384)   packed constants
                   out_ref):   # VMEM (B, OUT)
    f32 = jnp.float32
    b1 = scal_ref[0]
    b2 = scal_ref[1]

    sc = aux_ref[R_SC:R_SC + BH, 0:3 * BH]           # (16, 48) [su | I | sd]

    # ---- Conv2d(1,1,(3,10),stride=(1,2),pad=1) + ReLU ------------------------
    # One fused tap matmul (taps at 128-aligned lane offsets) + one combine matmul
    # that applies the H taps (shift-up / center / shift-down, zero at batch edges).
    x = x_ref[...]                                   # (16, 116)
    m1 = aux_ref[R_M1:R_M1 + W, :]                   # (116, 384)
    r1 = jnp.dot(x, m1, preferred_element_type=f32)  # (16, 384)
    taps1 = jnp.concatenate(
        [r1[:, 0:TAP], r1[:, TAP:2 * TAP], r1[:, 2 * TAP:3 * TAP]], axis=0)  # (48,128)
    y1 = jnp.maximum(jnp.dot(sc, taps1, preferred_element_type=f32) + b1, 0.0)

    # ---- Conv2d(1,1,(3,3),stride=(1,2),pad=1) + ReLU -------------------------
    # y1 columns >= 55 hold relu(b1) garbage; M2cat rows >= 55 are zero, so they
    # are annihilated.  Conv2 output columns come back pre-permuted [even | odd].
    m2 = aux_ref[R_M2:R_M2 + TAP, :]                 # (128, 384)
    r2 = jnp.dot(y1, m2, preferred_element_type=f32) # (16, 384)
    taps2 = jnp.concatenate(
        [r2[:, 0:TAP], r2[:, TAP:2 * TAP], r2[:, 2 * TAP:3 * TAP]], axis=0)
    y2 = jnp.maximum(jnp.dot(sc, taps2, preferred_element_type=f32) + b2, 0.0)

    # ---- MaxPool2d((1,2)): pool permutation folded into M2 -> elementwise max -
    pooled = jnp.maximum(y2[:, 0:WP], y2[:, WP:2 * WP])        # (16, 14)

    # ---- BatchNorm (folded) + flatten + Linear(112,20) + ReLU ----------------
    # e = pooled @ W1wide ; block-diagonal mask picks the h = row%H block ;
    # RSUM (identity stack) collapses the H blocks at M=16 ; per-batch row
    # aggregation is done with sublane-group sums (no M=2 matmuls).
    w1w = aux_ref[R_W1W:R_W1W + WP, 0:HW1]           # (14, 160)
    msk = aux_ref[R_MSK:R_MSK + BH, 0:HW1]           # (16, 160)
    rsum = aux_ref[R_RSUM:R_RSUM + HW1, 0:HID]       # (160, 20)
    e = jnp.dot(pooled, w1w, preferred_element_type=f32)       # (16, 160)
    s = jnp.dot(e * msk, rsum, preferred_element_type=f32)     # (16, 20)

    hid = jnp.concatenate(
        [jnp.sum(s[b * H:(b + 1) * H, :], axis=0, keepdims=True) for b in range(B)],
        axis=0)                                                 # (2, 20)
    hid = jnp.maximum(hid + aux_ref[R_B:R_B + 1, 0:HID], 0.0)

    # ---- Linear(20, 7) -------------------------------------------------------
    out = jnp.dot(hid, aux_ref[R_W2T:R_W2T + HID, 0:OUT],
                  preferred_element_type=f32)                   # (2, 7)
    out_ref[...] = out + aux_ref[R_B:R_B + 1, TAP:TAP + OUT]


# ------------------------------- wrapper -------------------------------------
@jax.jit
def seismic_forward(x, scal, aux):
    # (B, H, W) -> (B*H, W): contiguous leading-dim collapse (free).
    xr = x.astype(jnp.float32).reshape(BH, W)
    return pl.pallas_call(
        seismic_kernel,
        out_shape=jax.ShapeDtypeStruct((B, OUT), jnp.float32),
        in_specs=[pl.BlockSpec(memory_space=pltpu.MemorySpace.SMEM),
                  pl.BlockSpec(memory_space=pltpu.MemorySpace.VMEM),
                  pl.BlockSpec(memory_space=pltpu.MemorySpace.VMEM)],
        out_specs=pl.BlockSpec(memory_space=pltpu.MemorySpace.VMEM),
        # TODO(synk): for production batch sizes, put batch tiles on a leading
        # grid axis (constants pinned to block 0 via index_map) with
        # dimension_semantics=("parallel",...) so v7x's two TensorCores split it;
        # at B=2 the ~0.35us per-grid-step overhead exceeds the per-sample work.
    )(scal, xr, aux)


# --------------------------- parameter preparation ---------------------------
def conv_to_colmat(w_hw, w_in, w_out, stride, pad):
    """Fold a (KH,KW) 1->1 conv's W-dimension (stride + zero pad) into per-kh
    column-selection matrices of shape (KH, w_in, w_out)."""
    kh_n, kw_n = w_hw.shape
    M = np.zeros((kh_n, w_in, w_out), np.float32)
    for kh in range(kh_n):
        for ow in range(w_out):
            for kw in range(kw_n):
                j = stride * ow + kw - pad
                if 0 <= j < w_in:
                    M[kh, j, ow] = w_hw[kh, kw]
    return M


def make_params():
    key = jax.random.PRNGKey(0)
    ks = jax.random.split(key, 13)
    p = {}
    p["x"] = jax.random.normal(ks[0], (B, H, W), jnp.float32)
    p["w_conv1"] = 0.2 * jax.random.normal(ks[1], (1, 1, KH1, KW1), jnp.float32)
    p["b_conv1"] = 0.1 * jax.random.normal(ks[2], (1,), jnp.float32)
    p["w_conv2"] = 0.2 * jax.random.normal(ks[3], (1, 1, KH2, KW2), jnp.float32)
    p["b_conv2"] = 0.1 * jax.random.normal(ks[4], (1,), jnp.float32)
    p["bn_gamma"] = 1.0 + 0.1 * jax.random.normal(ks[5], (1,), jnp.float32)
    p["bn_beta"] = 0.1 * jax.random.normal(ks[6], (1,), jnp.float32)
    p["bn_rm"] = 0.1 * jax.random.normal(ks[7], (1,), jnp.float32)
    p["bn_rv"] = 0.5 + jax.random.uniform(ks[8], (1,), jnp.float32)
    p["w_fc1"] = 0.1 * jax.random.normal(ks[9], (HID, FLAT), jnp.float32)
    p["b_fc1"] = 0.1 * jax.random.normal(ks[10], (HID,), jnp.float32)
    p["w_fc2"] = 0.1 * jax.random.normal(ks[11], (OUT, HID), jnp.float32)
    p["b_fc2"] = 0.1 * jax.random.normal(ks[12], (OUT,), jnp.float32)
    return p


def make_kernel_operands(p):
    M1 = conv_to_colmat(np.asarray(p["w_conv1"])[0, 0], W, W1O, STRIDE_W, PAD)
    M2 = conv_to_colmat(np.asarray(p["w_conv2"])[0, 0], W1O, W2O, STRIDE_W, PAD)

    # Conv1 taps concatenated at 128-lane-aligned offsets.
    m1cat = np.zeros((W, 3 * TAP), np.float32)
    for kh in range(KH1):
        m1cat[:, kh * TAP:kh * TAP + W1O] = M1[kh]

    # Conv2 taps, 128 input rows (rows >= 55 zero swallow the y1 garbage columns),
    # output columns pre-permuted to [even | odd] so the (1,2) max-pool is a slice-max.
    m2cat = np.zeros((TAP, 3 * TAP), np.float32)
    for kh in range(KH2):
        for ow in range(W2O):
            col = (ow // 2) if (ow % 2 == 0) else (WP + ow // 2)
            m2cat[0:W1O, kh * TAP + col] = M2[kh, :, ow]

    # Combine matrix [shift-up | I | shift-down]; zeros at batch-block boundaries
    # implement the conv H zero-padding exactly.
    scm = np.zeros((BH, 3 * BH), np.float32)
    for bb in range(B):
        for h in range(H):
            r = bb * H + h
            if h > 0:
                scm[r, r - 1] = 1.0              # takes tap0 row r-1
            scm[r, BH + r] = 1.0                 # center tap
            if h < H - 1:
                scm[r, 2 * BH + r + 1] = 1.0     # takes tap2 row r+1

    # BatchNorm (eval) fold into fc1 (exact: scale/shift applied AFTER the max-pool).
    gamma = float(np.asarray(p["bn_gamma"])[0])
    beta = float(np.asarray(p["bn_beta"])[0])
    rm = float(np.asarray(p["bn_rm"])[0])
    rv = float(np.asarray(p["bn_rv"])[0])
    bn_scale = gamma / np.sqrt(rv + EPS)
    bn_shift = beta - rm * bn_scale

    w_fc1 = np.asarray(p["w_fc1"])                       # (20, 112)
    w_fc2 = np.asarray(p["w_fc2"])                       # (7, 20)
    b_fc1 = np.asarray(p["b_fc1"])
    b_fc2 = np.asarray(p["b_fc2"])

    w1_flat = w_fc1.T                                    # (112, 20), rows = h*WP + w
    w1_scaled = (bn_scale * w1_flat).astype(np.float32)  # BN scale folded
    b_fc1_f = (b_fc1 + bn_shift * w1_flat.sum(axis=0)).astype(np.float32)

    # "wide" fc1 weight: W1wide[w, h*HID+k] = w1_scaled[h*WP+w, k]
    w1wide = np.zeros((WP, HW1), np.float32)
    for h in range(H):
        w1wide[:, h * HID:(h + 1) * HID] = w1_scaled[h * WP:(h + 1) * WP, :]

    # block-diagonal pick mask and the identity-stack reducer
    mask = np.zeros((BH, HW1), np.float32)
    for bb in range(B):
        for h in range(H):
            mask[bb * H + h, h * HID:(h + 1) * HID] = 1.0
    rsum = np.tile(np.eye(HID, dtype=np.float32), (H, 1))        # (160, 20)

    # pack ALL constants into one aux operand (single DMA)
    aux = np.zeros((AUX_ROWS, AUX_COLS), np.float32)
    aux[R_M1:R_M1 + W, :] = m1cat
    aux[R_M2:R_M2 + TAP, :] = m2cat
    aux[R_SC:R_SC + BH, 0:3 * BH] = scm
    aux[R_W1W:R_W1W + WP, 0:HW1] = w1wide
    aux[R_MSK:R_MSK + BH, 0:HW1] = mask
    aux[R_RSUM:R_RSUM + HW1, 0:HID] = rsum
    aux[R_W2T:R_W2T + HID, 0:OUT] = w_fc2.T
    aux[R_B, 0:HID] = b_fc1_f
    aux[R_B, TAP:TAP + OUT] = b_fc2

    scal = np.array([float(np.asarray(p["b_conv1"])[0]),
                     float(np.asarray(p["b_conv2"])[0])], np.float32)
    return jnp.asarray(scal), jnp.asarray(aux)


# ------------------------------ pure-JAX reference ---------------------------
def reference_forward(p):
    HI = jax.lax.Precision.HIGHEST
    dn = ("NCHW", "OIHW", "NCHW")
    y = p["x"][:, None, :, :]
    y = jax.lax.conv_general_dilated(y, p["w_conv1"], (1, 2), ((1, 1), (1, 1)),
                                     dimension_numbers=dn, precision=HI)
    y = jax.nn.relu(y + p["b_conv1"].reshape(1, 1, 1, 1))
    y = jax.lax.conv_general_dilated(y, p["w_conv2"], (1, 2), ((1, 1), (1, 1)),
                                     dimension_numbers=dn, precision=HI)
    y = jax.nn.relu(y + p["b_conv2"].reshape(1, 1, 1, 1))
    y = jax.lax.reduce_window(y, -jnp.inf, jax.lax.max,
                              (1, 1, 1, 2), (1, 1, 1, 2), "VALID")
    y = (y - p["bn_rm"].reshape(1, 1, 1, 1)) / jnp.sqrt(p["bn_rv"].reshape(1, 1, 1, 1) + EPS)
    y = y * p["bn_gamma"].reshape(1, 1, 1, 1) + p["bn_beta"].reshape(1, 1, 1, 1)
    flat = y.reshape(y.shape[0], -1)                       # (B, 112)
    h = jax.nn.relu(jnp.dot(flat, p["w_fc1"].T, precision=HI) + p["b_fc1"])
    return jnp.dot(h, p["w_fc2"].T, precision=HI) + p["b_fc2"]


# ----------------------------------- main ------------------------------------
if __name__ == "__main__":
    params = make_params()
    scal, aux = make_kernel_operands(params)

    out = seismic_forward(params["x"], scal, aux)
    out = jax.block_until_ready(out)

    assert out.shape == (B, OUT), out.shape

    ref = reference_forward(params)
    max_err = float(jnp.max(jnp.abs(out - ref)))
    if not bool(jnp.allclose(out, ref, atol=2e-3, rtol=2e-3)):
        raise SystemExit(f"Pallas kernel mismatch vs reference (max abs err = {max_err})")

    print("KERNEL_OK")
</pallas_src>

<mosaic_0001>
module attributes {stable_mosaic.version = 11 : i64} {
  func.func @seismic_kernel(%arg0: memref<2xf32, #tpu.memory_space<smem>>, %arg1: memref<16x116xf32, #tpu.memory_space<vmem>>, %arg2: memref<488x384xf32, #tpu.memory_space<vmem>>, %arg3: memref<2x7xf32, #tpu.memory_space<vmem>>) attributes {dimension_semantics = [], scalar_prefetch = 0 : i64, scratch_operands = 0 : i64, tpu.core_type = #tpu.core_type<tc>} {
    %c0 = arith.constant 0 : index
    %0 = memref.load %arg0[%c0] : memref<2xf32, #tpu.memory_space<smem>>
    %c1 = arith.constant 1 : index
    %1 = memref.load %arg0[%c1] : memref<2xf32, #tpu.memory_space<smem>>
    %c248 = arith.constant 248 : index
    %c0_0 = arith.constant 0 : index
    %2 = vector.load %arg2[%c248, %c0_0] : memref<488x384xf32, #tpu.memory_space<vmem>>, vector<16x48xf32>
    %c0_1 = arith.constant 0 : index
    %c0_2 = arith.constant 0 : index
    %3 = vector.load %arg1[%c0_1, %c0_2] : memref<16x116xf32, #tpu.memory_space<vmem>>, vector<16x116xf32>
    %c0_3 = arith.constant 0 : index
    %c0_4 = arith.constant 0 : index
    %4 = vector.load %arg2[%c0_3, %c0_4] : memref<488x384xf32, #tpu.memory_space<vmem>>, vector<116x384xf32>
    %cst = arith.constant dense<0.000000e+00> : vector<16x384xf32>
    %5 = tpu.matmul %3, %4, %cst {dimension_numbers = #tpu.dot_dimension_numbers<[1], [0], [0], [1], [0, 0, 1, 1], [], []>} : vector<16x116xf32>, vector<116x384xf32>, vector<16x384xf32> -> vector<16x384xf32>
    %6 = vector.extract_strided_slice %5 {offsets = [0, 0], sizes = [16, 128], strides = [1, 1]} : vector<16x384xf32> to vector<16x128xf32>
    %7 = vector.extract_strided_slice %5 {offsets = [0, 128], sizes = [16, 128], strides = [1, 1]} : vector<16x384xf32> to vector<16x128xf32>
    %8 = vector.extract_strided_slice %5 {offsets = [0, 256], sizes = [16, 128], strides = [1, 1]} : vector<16x384xf32> to vector<16x128xf32>
    %9 = tpu.concatenate %6, %7, %8 in 0 : vector<16x128xf32>, vector<16x128xf32>, vector<16x128xf32> -> vector<48x128xf32>
    %cst_5 = arith.constant dense<0.000000e+00> : vector<16x128xf32>
    %10 = tpu.matmul %2, %9, %cst_5 {dimension_numbers = #tpu.dot_dimension_numbers<[1], [0], [0], [1], [0, 0, 1, 1], [], []>} : vector<16x48xf32>, vector<48x128xf32>, vector<16x128xf32> -> vector<16x128xf32>
    %11 = vector.broadcast %0 : f32 to vector<16x128xf32>
    %12 = arith.addf %10, %11 : vector<16x128xf32>
    %cst_6 = arith.constant 0.000000e+00 : f32
    %13 = vector.broadcast %cst_6 : f32 to vector<16x128xf32>
    %14 = arith.maximumf %12, %13 : vector<16x128xf32>
    %c120 = arith.constant 120 : index
    %c0_7 = arith.constant 0 : index
    %15 = vector.load %arg2[%c120, %c0_7] : memref<488x384xf32, #tpu.memory_space<vmem>>, vector<128x384xf32>
    %cst_8 = arith.constant dense<0.000000e+00> : vector<16x384xf32>
    %16 = tpu.matmul %14, %15, %cst_8 {dimension_numbers = #tpu.dot_dimension_numbers<[1], [0], [0], [1], [0, 0, 1, 1], [], []>} : vector<16x128xf32>, vector<128x384xf32>, vector<16x384xf32> -> vector<16x384xf32>
    %17 = vector.extract_strided_slice %16 {offsets = [0, 0], sizes = [16, 128], strides = [1, 1]} : vector<16x384xf32> to vector<16x128xf32>
    %18 = vector.extract_strided_slice %16 {offsets = [0, 128], sizes = [16, 128], strides = [1, 1]} : vector<16x384xf32> to vector<16x128xf32>
    %19 = vector.extract_strided_slice %16 {offsets = [0, 256], sizes = [16, 128], strides = [1, 1]} : vector<16x384xf32> to vector<16x128xf32>
    %20 = tpu.concatenate %17, %18, %19 in 0 : vector<16x128xf32>, vector<16x128xf32>, vector<16x128xf32> -> vector<48x128xf32>
    %cst_9 = arith.constant dense<0.000000e+00> : vector<16x128xf32>
    %21 = tpu.matmul %2, %20, %cst_9 {dimension_numbers = #tpu.dot_dimension_numbers<[1], [0], [0], [1], [0, 0, 1, 1], [], []>} : vector<16x48xf32>, vector<48x128xf32>, vector<16x128xf32> -> vector<16x128xf32>
    %22 = vector.broadcast %1 : f32 to vector<16x128xf32>
    %23 = arith.addf %21, %22 : vector<16x128xf32>
    %cst_10 = arith.constant 0.000000e+00 : f32
    %24 = vector.broadcast %cst_10 : f32 to vector<16x128xf32>
    %25 = arith.maximumf %23, %24 : vector<16x128xf32>
    %26 = vector.extract_strided_slice %25 {offsets = [0, 0], sizes = [16, 14], strides = [1, 1]} : vector<16x128xf32> to vector<16x14xf32>
    %27 = vector.extract_strided_slice %25 {offsets = [0, 14], sizes = [16, 14], strides = [1, 1]} : vector<16x128xf32> to vector<16x14xf32>
    %28 = arith.maximumf %26, %27 : vector<16x14xf32>
    %c264 = arith.constant 264 : index
    %c0_11 = arith.constant 0 : index
    %29 = vector.load %arg2[%c264, %c0_11] : memref<488x384xf32, #tpu.memory_space<vmem>>, vector<14x160xf32>
    %c280 = arith.constant 280 : index
    %c0_12 = arith.constant 0 : index
    %30 = vector.load %arg2[%c280, %c0_12] : memref<488x384xf32, #tpu.memory_space<vmem>>, vector<16x160xf32>
    %c296 = arith.constant 296 : index
    %c0_13 = arith.constant 0 : index
    %31 = vector.load %arg2[%c296, %c0_13] : memref<488x384xf32, #tpu.memory_space<vmem>>, vector<160x20xf32>
    %cst_14 = arith.constant dense<0.000000e+00> : vector<16x160xf32>
    %32 = tpu.matmul %28, %29, %cst_14 {dimension_numbers = #tpu.dot_dimension_numbers<[1], [0], [0], [1], [0, 0, 1, 1], [], []>} : vector<16x14xf32>, vector<14x160xf32>, vector<16x160xf32> -> vector<16x160xf32>
    %33 = arith.mulf %32, %30 : vector<16x160xf32>
    %cst_15 = arith.constant dense<0.000000e+00> : vector<16x20xf32>
    %34 = tpu.matmul %33, %31, %cst_15 {dimension_numbers = #tpu.dot_dimension_numbers<[1], [0], [0], [1], [0, 0, 1, 1], [], []>} : vector<16x160xf32>, vector<160x20xf32>, vector<16x20xf32> -> vector<16x20xf32>
    %35 = vector.extract_strided_slice %34 {offsets = [0, 0], sizes = [8, 20], strides = [1, 1]} : vector<16x20xf32> to vector<8x20xf32>
    %cst_16 = arith.constant dense<0.000000e+00> : vector<20xf32>
    %36 = vector.multi_reduction <add>, %35, %cst_16 [0] : vector<8x20xf32> to vector<20xf32>
    %37 = vector.shape_cast %36 : vector<20xf32> to vector<1x20xf32>
    %38 = vector.extract_strided_slice %34 {offsets = [8, 0], sizes = [8, 20], strides = [1, 1]} : vector<16x20xf32> to vector<8x20xf32>
    %cst_17 = arith.constant dense<0.000000e+00> : vector<20xf32>
    %39 = vector.multi_reduction <add>, %38, %cst_17 [0] : vector<8x20xf32> to vector<20xf32>
    %40 = vector.shape_cast %39 : vector<20xf32> to vector<1x20xf32>
    %41 = tpu.concatenate %37, %40 in 0 : vector<1x20xf32>, vector<1x20xf32> -> vector<2x20xf32>
    %c480 = arith.constant 480 : index
    %c0_18 = arith.constant 0 : index
    %42 = vector.load %arg2[%c480, %c0_18] : memref<488x384xf32, #tpu.memory_space<vmem>>, vector<1x20xf32>
    %43 = vector.broadcast %42 : vector<1x20xf32> to vector<2x20xf32>
    %44 = arith.addf %41, %43 : vector<2x20xf32>
    %cst_19 = arith.constant 0.000000e+00 : f32
    %45 = vector.broadcast %cst_19 : f32 to vector<2x20xf32>
    %46 = arith.maximumf %44, %45 : vector<2x20xf32>
    %c456 = arith.constant 456 : index
    %c0_20 = arith.constant 0 : index
    %47 = vector.load %arg2[%c456, %c0_20] : memref<488x384xf32, #tpu.memory_space<vmem>>, vector<20x7xf32>
    %cst_21 = arith.constant dense<0.000000e+00> : vector<2x7xf32>
    %48 = tpu.matmul %46, %47, %cst_21 {dimension_numbers = #tpu.dot_dimension_numbers<[1], [0], [0], [1], [0, 0, 1, 1], [], []>} : vector<2x20xf32>, vector<20x7xf32>, vector<2x7xf32> -> vector<2x7xf32>
    %c480_22 = arith.constant 480 : index
    %c128 = arith.constant 128 : index
    %49 = vector.load %arg2[%c480_22, %c128] : memref<488x384xf32, #tpu.memory_space<vmem>>, vector<1x7xf32>
    %50 = vector.broadcast %49 : vector<1x7xf32> to vector<2x7xf32>
    %51 = arith.addf %48, %50 : vector<2x7xf32>
    %c0_23 = arith.constant 0 : index
    %c0_24 = arith.constant 0 : index
    %52 = vector.load %arg3[%c0_23, %c0_24] : memref<2x7xf32, #tpu.memory_space<vmem>>, vector<2x7xf32>
    tpu.vector_store %arg3[%c0_23, %c0_24], %51 {strides = array<i32>} : memref<2x7xf32, #tpu.memory_space<vmem>>, vector<2x7xf32>,
    return
  }
}

</mosaic_0001>

<llo_original>
// kernel: seismic_forward.1
$region0: #{seismic_forward.1}
  #allocation0 [shape = 'u32[]', space=smem, size = 0x4, offset = 0x4, fixed_abs, tag = 'smem constant byte address 0x4 - core index']
  #allocation1 [shape = 'u32[144,128]{1,0:T(1,128)}', space=vmem, size = 0x12000, scoped, tag = 'internal scratch']
  %s0 = inlined_call_operand.vmem [shape: f32[2], index: 0, kind: input, shape index: {}]
  %s1 = inlined_call_operand.hbm [shape: f32[16,116], index: 1, kind: input, shape index: {}]
  %s2 = inlined_call_operand.hbm [shape: f32[488,384], index: 2, kind: input, shape index: {}]
  %s3 = inlined_call_operand.hbm [shape: f32[2,7], index: 3, kind: output, shape index: {}]
  %s4 = sld [smem:[#allocation0]]
  $region34: #{seismic_forward.1} parent=0
    _
  %s6 = ssub.s32 1, %s4
  %s7 = scalar_select 0, %s6, %s4
  $region1: #{seismic_forward.1} parent=0
    #allocation2 [shape = 'u8[512]{0}', space=smem, size = 0x200, scoped, tag = 'input window, operand 0, single buffered']
    #allocation3 [shape = 's32[1]{0}', space=sflag, size = 0x4, scoped, tag = 'scoped memory for seismic_forward.1']
    #allocation4 [shape = 's32[1]{0}', space=sflag, size = 0x4, scoped, tag = 'scoped memory for seismic_forward.1']
    #allocation5 [shape = 's32[1]{0}', space=sflag, size = 0x4, scoped, tag = 'scoped memory for seismic_forward.1']
    #allocation6 [shape = 'u8[8192]{0}', space=vmem, size = 0x2000, scoped, tag = 'input window, operand 1, single buffered']
    #allocation7 [shape = 'u8[749568]{0}', space=vmem, size = 0xb7000, scoped, tag = 'input window, operand 2, single buffered']
    #allocation8 [shape = 's32[1]{0}', space=sflag, size = 0x4, scoped, tag = 'scoped memory for seismic_forward.1']
    #allocation9 [shape = 'u8[1024]{0}', space=vmem, size = 0x400, scoped, tag = 'output window, operand 0, single buffered']
    %8 = vsyncpa [#allocation5], 0
    %9 = vsyncpa [#allocation3], 0
    %10 = vsyncpa [#allocation8], 0
    %11 = vsyncpa [#allocation4], 0
    // Predicated region
    $region2: #{seismic_forward.1} parent=1 // pred_check
      _
    $region3: #{seismic_forward.1} parent=1 // pred_check_branch
      %13 = sbr.rel (0) target = $region5
    $region4: #{seismic_forward.1} parent=1 // pred_region
      %s15 = ssub.s32 16, 16
      %16 = vsyncadd [#allocation5], %s15
      %s18 = sshll.u32 %s0, 4
      %s19 = int_to_ptr.vmem [resolvable:$true] %s18
      %21 = dma.vmem_to_smem %s19, 16, [#allocation2], [#allocation5]
    $region5: #{seismic_forward.1} parent=1 // pred_fallthru
      _
    // Predicated region
    $region6: #{seismic_forward.1} parent=1 // pred_check
      _
    $region7: #{seismic_forward.1} parent=1 // pred_check_branch
      %23 = sbr.rel (0) target = $region9
    $region8: #{seismic_forward.1} parent=1 // pred_region
      %s25 = ssub.s32 256, 256
      %26 = vsyncadd [#allocation3], %s25
      %s27 = sshll.u32 [#allocation6], 4
      %s28 = int_to_ptr.vmem [resolvable:$true] %s27
      %33 = dma.hbm_to_vmem [thread:$0]  %s1, 256, %s28, [#allocation3], 128, 128, 8
    $region9: #{seismic_forward.1} parent=1 // pred_fallthru
      _
    // Predicated region
    $region10: #{seismic_forward.1} parent=1 // pred_check
      _
    $region11: #{seismic_forward.1} parent=1 // pred_check_branch
      %35 = sbr.rel (0) target = $region13
    $region12: #{seismic_forward.1} parent=1 // pred_region
      %s37 = ssub.s32 23424, 23424
      %38 = vsyncadd [#allocation8], %s37
      %s39 = sshll.u32 [#allocation7], 4
      %s40 = int_to_ptr.vmem [resolvable:$true] %s39
      %45 = dma.hbm_to_vmem [thread:$0]  %s2, 23424, %s40, [#allocation8], 384, 384, 24
    $region13: #{seismic_forward.1} parent=1 // pred_fallthru
      _
    // Predicated region
    $region14: #{seismic_forward.1} parent=1 // pred_check
      _
    $region15: #{seismic_forward.1} parent=1 // pred_check_branch
      %47 = sbr.rel (0) target = $region17
    $region16: #{seismic_forward.1} parent=1 // pred_region
      %48 = dma.done [#allocation5], 16
    $region17: #{seismic_forward.1} parent=1 // pred_fallthru
      _
    // Predicated region
    $region18: #{seismic_forward.1} parent=1 // pred_check
      _
    $region19: #{seismic_forward.1} parent=1 // pred_check_branch
      %50 = sbr.rel (0) target = $region21
    $region20: #{seismic_forward.1} parent=1 // pred_region
      %51 = dma.done [#allocation3], 256
    $region21: #{seismic_forward.1} parent=1 // pred_fallthru
      _
    // Predicated region
    $region22: #{seismic_forward.1} parent=1 // pred_check
      _
    $region23: #{seismic_forward.1} parent=1 // pred_check_branch
      %53 = sbr.rel (0) target = $region25
    $region24: #{seismic_forward.1} parent=1 // pred_region
      %54 = dma.done [#allocation8], 23424
    $region25: #{seismic_forward.1} parent=1 // pred_fallthru
      _
    %55 = sfence
    %s56 = sld [smem:[#allocation2]]
    %s57 = sld [smem:[#allocation2 + $0x1]]
    %v58 = vld [vmem:[#allocation7 + $0x2e8] sm:$0xff]
    %v59 = vld [vmem:[#allocation7 + $0x300] sm:$0xff]
    %v60 = vld [vmem:[#allocation6] sm:$0xff]
    %v61 = vld [vmem:[#allocation6 + $0x8] sm:$0xff]
    %v62 = vld [vmem:[#allocation7] sm:$0xff]
    %v63 = vld [vmem:[#allocation7 + $0x8] sm:$0xff]
    %v64 = vld [vmem:[#allocation7 + $0x10] sm:$0xff]
    %v65 = vld [vmem:[#allocation7 + $0x18] sm:$0xff]
    %v66 = vld [vmem:[#allocation7 + $0x20] sm:$0xff]
    %v67 = vld [vmem:[#allocation7 + $0x28] sm:$0xff]
    %v68 = vld [vmem:[#allocation7 + $0x30] sm:$0xff]
    %v69 = vld [vmem:[#allocation7 + $0x38] sm:$0xff]
    %v70 = vld [vmem:[#allocation7 + $0x40] sm:$0xff]
    %v71 = vld [vmem:[#allocation7 + $0x48] sm:$0xff]
    %v72 = vld [vmem:[#allocation7 + $0x50] sm:$0xff]
    %v73 = vld [vmem:[#allocation7 + $0x58] sm:$0xff]
    %v74 = vld [vmem:[#allocation7 + $0x60] sm:$0xff]
    %v75 = vld [vmem:[#allocation7 + $0x68] sm:$0xff]
    %v76 = vld [vmem:[#allocation7 + $0x70] sm:$0xff]
    %v77 = vld [vmem:[#allocation7 + $0x78] sm:$0xff]
    %v78 = vld [vmem:[#allocation7 + $0x80] sm:$0xff]
    %v79 = vld [vmem:[#allocation7 + $0x88] sm:$0xff]
    %v80 = vld [vmem:[#allocation7 + $0x90] sm:$0xff]
    %v81 = vld [vmem:[#allocation7 + $0x98] sm:$0xff]
    %v82 = vld [vmem:[#allocation7 + $0xa0] sm:$0xff]
    %v83 = vld [vmem:[#allocation7 + $0xa8] sm:$0xff]
    %v84 = vld [vmem:[#allocation7 + $0xb0] sm:$0xff]
    %v85 = vld [vmem:[#allocation7 + $0xb8] sm:$0xff]
    %v86 = vld [vmem:[#allocation7 + $0xc0] sm:$0xff]
    %v87 = vld [vmem:[#allocation7 + $0xc8] sm:$0xff]
    %v88 = vld [vmem:[#allocation7 + $0xd0] sm:$0xff]
    %v89 = vld [vmem:[#allocation7 + $0xd8] sm:$0xff]
    %v90 = vld [vmem:[#allocation7 + $0xe0] sm:$0xff]
    %v91 = vld [vmem:[#allocation7 + $0xe8] sm:$0xff]
    %v92 = vld [vmem:[#allocation7 + $0xf0] sm:$0xff]
    %v93 = vld [vmem:[#allocation7 + $0xf8] sm:$0xff]
    %v94 = vld [vmem:[#allocation7 + $0x100] sm:$0xff]
    %v95 = vld [vmem:[#allocation7 + $0x108] sm:$0xff]
    %v96 = vld [vmem:[#allocation7 + $0x110] sm:$0xff]
    %v97 = vld [vmem:[#allocation7 + $0x118] sm:$0xff]
    %v98 = vld [vmem:[#allocation7 + $0x120] sm:$0xff]
    %v99 = vld [vmem:[#allocation7 + $0x128] sm:$0xff]
    %v100 = vld [vmem:[#allocation7 + $0x130] sm:$0xff]
    %v101 = vld [vmem:[#allocation7 + $0x138] sm:$0xff]
    %v102 = vld [vmem:[#allocation7 + $0x140] sm:$0xff]
    %v103 = vld [vmem:[#allocation7 + $0x148] sm:$0xff]
    %v104 = vld [vmem:[#allocation7 + $0x150] sm:$0xf]
    %v105 = vld [vmem:[#allocation7 + $0x158] sm:$0xf]
    %v106 = vld [vmem:[#allocation7 + $0x160] sm:$0xf]
    %vm107 = vcmask 949248
    %v109 = vsel %vm107, %v60, 0
    %v112 = vsel %vm107, %v61, 0
    %vm114 = vcmask 1043456
    %v116 = vsel %vm114, %v104, 0
    %v119 = vsel %vm114, %v105, 0
    %v122 = vsel %vm114, %v106, 0
    %124 = vmatprep.subr.mxu0 %v63
    %125 = vmatpush1.msra.mxu0 %v62
    %126 = vmatprep.subr.mxu0 %v66
    %127 = vmatpush1.msra.mxu0 %v65
    %128 = vmatprep.subr.mxu0 %v69
    %129 = vmatpush1.msra.mxu0 %v68
    %130 = vmatprep.subr.mxu0 %v72
    %131 = vmatpush1.msra.mxu0 %v71
    %132 = vmatprep.subr.mxu0 %v75
    %133 = vmatpush1.msra.mxu0 %v74
    %134 = vmatprep.subr.mxu0 %v78
    %135 = vmatpush1.msra.mxu0 %v77
    %136 = vmatprep.subr.mxu0 %v81
    %137 = vmatpush1.msra.mxu0 %v80
    %138 = vmatprep.subr.mxu0 %v84
    %139 = vmatpush1.msra.mxu0 %v83
    %140 = vmatprep.subr.mxu0 %v87
    %141 = vmatpush1.msra.mxu0 %v86
    %142 = vmatprep.subr.mxu0 %v90
    %143 = vmatpush1.msra.mxu0 %v89
    %144 = vmatprep.subr.mxu0 %v93
    %145 = vmatpush1.msra.mxu0 %v92
    %146 = vmatprep.subr.mxu0 %v96
    %147 = vmatpush1.msra.mxu0 %v95
    %148 = vmatprep.subr.mxu0 %v99
    %149 = vmatpush1.msra.mxu0 %v98
    %150 = vmatprep.subr.mxu0 %v102
    %151 = vmatpush1.msra.mxu0 %v101
    %152 = vmatprep.subr.mxu0 %v119
    %153 = vmatpush1.msra.mxu0 %v116
    %154 = vmatprep.subr.mxu0 0.0
    %155 = vmatpush1.msra.mxu0 0.0
    %156 = vmatprep.subr.mxu0 0.0
    %157 = vmatpush1.msra.mxu0 0.0
    %158 = vmatprep.subr.mxu0 0.0
    %159 = vmatpush1.msra.mxu0 0.0
    %160 = vmatprep.subr.mxu0 0.0
    %161 = vmatpush1.msra.mxu0 0.0
    %162 = vmatprep.subr.mxu0 0.0
    %163 = vmatpush1.msra.mxu0 0.0
    %164 = vmatprep.subr.mxu0 0.0
    %165 = vmatpush1.msra.mxu0 0.0
    %166 = vmatprep.subr.mxu0 0.0
    %167 = vmatpush1.msra.mxu0 0.0
    %168 = vmatprep.subr.mxu0 0.0
    %169 = vmatpush1.msra.mxu0 0.0
    %170 = vmatprep.subr.mxu0 0.0
    %171 = vmatpush1.msra.mxu0 0.0
    %172 = vmatprep.subr.mxu0 0.0
    %173 = vmatpush1.msra.mxu0 0.0
    %174 = vmatprep.subr.mxu0 0.0
    %175 = vmatpush1.msra.mxu0 0.0
    %176 = vmatprep.subr.mxu0 0.0
    %177 = vmatpush1.msra.mxu0 0.0
    %178 = vmatprep.subr.mxu0 0.0
    %179 = vmatpush1.msra.mxu0 0.0
    %180 = vmatprep.subr.mxu0 0.0
    %181 = vmatpush1.msra.mxu0 0.0
    %182 = vmatprep.subr.mxu0 0.0
    %183 = vmatpush1.msra.mxu0 0.0
    %184 = vmatprep.subr.mxu0 0.0
    %185 = vmatpush1.msra.mxu0 0.0
    %186 = vmatprep.subr.mxu0 0.0
    %187 = vmatpush1.msra.mxu0 0.0
    %188 = vmatprep.mubr.f32.mxu0 0.0
    %189 = vmatmul.mubr.f32.gmra.mrb[0].mxu0 %v109
    %v190 = vpop.f32.mrb[0].mxu0
    %v191 = vadd.f32 0.0, %v190
    %v192 = vpop.f32.mrb[0].mxu0
    %v193 = vadd.f32 0.0, %v192
    %194 = vmatprep.mubr.f32.mxu0 0.0
    %195 = vmatmul.mubr.f32.gmra.mrb[0].mxu0 %v112
    %v196 = vpop.f32.mrb[0].mxu0
    %v197 = vadd.f32 0.0, %v196
    %v198 = vpop.f32.mrb[0].mxu0
    %v199 = vadd.f32 0.0, %v198
    %200 = vdwg.mxu0
    %201 = vmatprep.subr.mxu0 0.0
    %202 = vmatpush1.msra.mxu0 %v64
    %203 = vmatprep.subr.mxu0 0.0
    %204 = vmatpush1.msra.mxu0 %v67
    %205 = vmatprep.subr.mxu0 0.0
    %206 = vmatpush1.msra.mxu0 %v70
    %207 = vmatprep.subr.mxu0 0.0
    %208 = vmatpush1.msra.mxu0 %v73
    %209 = vmatprep.subr.mxu0 0.0
    %210 = vmatpush1.msra.mxu0 %v76
    %211 = vmatprep.subr.mxu0 0.0
    %212 = vmatpush1.msra.mxu0 %v79
    %213 = vmatprep.subr.mxu0 0.0
    %214 = vmatpush1.msra.mxu0 %v82
    %215 = vmatprep.subr.mxu0 0.0
    %216 = vmatpush1.msra.mxu0 %v85
    %217 = vmatprep.subr.mxu0 0.0
    %218 = vmatpush1.msra.mxu0 %v88
    %219 = vmatprep.subr.mxu0 0.0
    %220 = vmatpush1.msra.mxu0 %v91
    %221 = vmatprep.subr.mxu0 0.0
    %222 = vmatpush1.msra.mxu0 %v94
    %223 = vmatprep.subr.mxu0 0.0
    %224 = vmatpush1.msra.mxu0 %v97
    %225 = vmatprep.subr.mxu0 0.0
    %226 = vmatpush1.msra.mxu0 %v100
    %227 = vmatprep.subr.mxu0 0.0
    %228 = vmatpush1.msra.mxu0 %v103
    %229 = vmatprep.subr.mxu0 0.0
    %230 = vmatpush1.msra.mxu0 %v122
    %231 = vmatprep.subr.mxu0 0.0
    %232 = vmatpush1.msra.mxu0 0.0
    %233 = vmatprep.subr.mxu0 0.0
    %234 = vmatpush1.msra.mxu0 0.0
    %235 = vmatprep.subr.mxu0 0.0
    %236 = vmatpush1.msra.mxu0 0.0
    %237 = vmatprep.subr.mxu0 0.0
    %238 = vmatpush1.msra.mxu0 0.0
    %239 = vmatprep.subr.mxu0 0.0
    %240 = vmatpush1.msra.mxu0 0.0
    %241 = vmatprep.subr.mxu0 0.0
    %242 = vmatpush1.msra.mxu0 0.0
    %243 = vmatprep.subr.mxu0 0.0
    %244 = vmatpush1.msra.mxu0 0.0
    %245 = vmatprep.subr.mxu0 0.0
    %246 = vmatpush1.msra.mxu0 0.0
    %247 = vmatprep.subr.mxu0 0.0
    %248 = vmatpush1.msra.mxu0 0.0
    %249 = vmatprep.subr.mxu0 0.0
    %250 = vmatpush1.msra.mxu0 0.0
    %251 = vmatprep.subr.mxu0 0.0
    %252 = vmatpush1.msra.mxu0 0.0
    %253 = vmatprep.subr.mxu0 0.0
    %254 = vmatpush1.msra.mxu0 0.0
    %255 = vmatprep.subr.mxu0 0.0
    %256 = vmatpush1.msra.mxu0 0.0
    %257 = vmatprep.subr.mxu0 0.0
    %258 = vmatpush1.msra.mxu0 0.0
    %259 = vmatprep.subr.mxu0 0.0
    %260 = vmatpush1.msra.mxu0 0.0
    %261 = vmatprep.subr.mxu0 0.0
    %262 = vmatpush1.msra.mxu0 0.0
    %263 = vmatprep.subr.mxu0 0.0
    %264 = vmatpush1.msra.mxu0 0.0
    %265 = vmatprep.mubr.f32.mxu0 0.0
    %266 = vmatmul.mubr.f32.gmra.mrb[0].mxu0 %v109
    %v267 = vpop.f32.mrb[0].mxu0
    %v268 = vadd.f32 0.0, %v267
    %v269 = vpop.f32.mrb[0].mxu0
    %270 = vmatprep.mubr.f32.mxu0 0.0
    %271 = vmatmul.mubr.f32.gmra.mrb[0].mxu0 %v112
    %v272 = vpop.f32.mrb[0].mxu0
    %v273 = vadd.f32 0.0, %v272
    %v274 = vpop.f32.mrb[0].mxu0
    %275 = vdwg.mxu0
    %v276 = vstv %s56
    %vm277 = vcmask 392192
    %v279 = vsel %vm277, %v58, 0
    %v282 = vsel %vm277, %v59, 0
    %284 = vmatprep.subr.mxu0 0.0
    %285 = vmatpush1.msra.mxu0 %v191
    %286 = vmatprep.subr.mxu0 0.0
    %287 = vmatpush1.msra.mxu0 %v197
    %288 = vmatprep.subr.mxu0 0.0
    %289 = vmatpush1.msra.mxu0 %v193
    %290 = vmatprep.subr.mxu0 0.0
    %291 = vmatpush1.msra.mxu0 %v199
    %292 = vmatprep.subr.mxu0 0.0
    %293 = vmatpush1.msra.mxu0 %v268
    %294 = vmatprep.subr.mxu0 0.0
    %295 = vmatpush1.msra.mxu0 %v273
    %296 = vmatprep.subr.mxu0 0.0
    %297 = vmatpush1.msra.mxu0 0.0
    %298 = vmatprep.subr.mxu0 0.0
    %299 = vmatpush1.msra.mxu0 0.0
    %300 = vmatprep.subr.mxu0 0.0
    %301 = vmatpush1.msra.mxu0 0.0
    %302 = vmatprep.subr.mxu0 0.0
    %303 = vmatpush1.msra.mxu0 0.0
    %304 = vmatprep.subr.mxu0 0.0
    %305 = vmatpush1.msra.mxu0 0.0
    %306 = vmatprep.subr.mxu0 0.0
    %307 = vmatpush1.msra.mxu0 0.0
    %308 = vmatprep.subr.mxu0 0.0
    %309 = vmatpush1.msra.mxu0 0.0
    %310 = vmatprep.subr.mxu0 0.0
    %311 = vmatpush1.msra.mxu0 0.0
    %312 = vmatprep.subr.mxu0 0.0
    %313 = vmatpush1.msra.mxu0 0.0
    %314 = vmatprep.subr.mxu0 0.0
    %315 = vmatpush1.msra.mxu0 0.0
    %316 = vmatprep.subr.mxu0 0.0
    %317 = vmatpush1.msra.mxu0 0.0
    %318 = vmatprep.subr.mxu0 0.0
    %319 = vmatpush1.msra.mxu0 0.0
    %320 = vmatprep.subr.mxu0 0.0
    %321 = vmatpush1.msra.mxu0 0.0
    %322 = vmatprep.subr.mxu0 0.0
    %323 = vmatpush1.msra.mxu0 0.0
    %324 = vmatprep.subr.mxu0 0.0
    %325 = vmatpush1.msra.mxu0 0.0
    %326 = vmatprep.subr.mxu0 0.0
    %327 = vmatpush1.msra.mxu0 0.0
    %328 = vmatprep.subr.mxu0 0.0
    %329 = vmatpush1.msra.mxu0 0.0
    %330 = vmatprep.subr.mxu0 0.0
    %331 = vmatpush1.msra.mxu0 0.0
    %332 = vmatprep.subr.mxu0 0.0
    %333 = vmatpush1.msra.mxu0 0.0
    %334 = vmatprep.subr.mxu0 0.0
    %335 = vmatpush1.msra.mxu0 0.0
    %336 = vmatprep.subr.mxu0 0.0
    %337 = vmatpush1.msra.mxu0 0.0
    %338 = vmatprep.subr.mxu0 0.0
    %339 = vmatpush1.msra.mxu0 0.0
    %340 = vmatprep.subr.mxu0 0.0
    %341 = vmatpush1.msra.mxu0 0.0
    %342 = vmatprep.subr.mxu0 0.0
    %343 = vmatpush1.msra.mxu0 0.0
    %344 = vmatprep.subr.mxu0 0.0
    %345 = vmatpush1.msra.mxu0 0.0
    %346 = vmatprep.subr.mxu0 0.0
    %347 = vmatpush1.msra.mxu0 0.0
    %348 = vmatprep.mubr.f32.mxu0 0.0
    %349 = vmatmul.mubr.f32.gmra.mrb[0].mxu0 %v279
    %v350 = vpop.f32.mrb[0].mxu0
    %v351 = vadd.f32 %v276, %v350
    %v352 = vpop.f32.mrb[0].mxu0
    %353 = vmatprep.mubr.f32.mxu0 0.0
    %354 = vmatmul.mubr.f32.gmra.mrb[0].mxu0 %v282
    %v355 = vpop.f32.mrb[0].mxu0
    %v356 = vadd.f32 %v276, %v355
    %v357 = vpop.f32.mrb[0].mxu0
    %358 = vdwg.mxu0
    %v359 = vmax.f32 %v351, 0.0
    %v360 = vmax.f32 %v356, 0.0
    %v361 = vld [vmem:[#allocation7 + $0x168] sm:$0xff]
    %v362 = vld [vmem:[#allocation7 + $0x170] sm:$0xff]
    %v363 = vld [vmem:[#allocation7 + $0x178] sm:$0xff]
    %v364 = vld [vmem:[#allocation7 + $0x180] sm:$0xff]
    %v365 = vld [vmem:[#allocation7 + $0x188] sm:$0xff]
    %v366 = vld [vmem:[#allocation7 + $0x190] sm:$0xff]
    %v367 = vld [vmem:[#allocation7 + $0x198] sm:$0xff]
    %v368 = vld [vmem:[#allocation7 + $0x1a0] sm:$0xff]
    %v369 = vld [vmem:[#allocation7 + $0x1a8] sm:$0xff]
    %v370 = vld [vmem:[#allocation7 + $0x1b0] sm:$0xff]
    %v371 = vld [vmem:[#allocation7 + $0x1b8] sm:$0xff]
    %v372 = vld [vmem:[#allocation7 + $0x1c0] sm:$0xff]
    %v373 = vld [vmem:[#allocation7 + $0x1c8] sm:$0xff]
    %v374 = vld [vmem:[#allocation7 + $0x1d0] sm:$0xff]
    %v375 = vld [vmem:[#allocation7 + $0x1d8] sm:$0xff]
    %v376 = vld [vmem:[#allocation7 + $0x1e0] sm:$0xff]
    %v377 = vld [vmem:[#allocation7 + $0x1e8] sm:$0xff]
    %v378 = vld [vmem:[#allocation7 + $0x1f0] sm:$0xff]
    %v379 = vld [vmem:[#allocation7 + $0x1f8] sm:$0xff]
    %v380 = vld [vmem:[#allocation7 + $0x200] sm:$0xff]
    %v381 = vld [vmem:[#allocation7 + $0x208] sm:$0xff]
    %v382 = vld [vmem:[#allocation7 + $0x210] sm:$0xff]
    %v383 = vld [vmem:[#allocation7 + $0x218] sm:$0xff]
    %v384 = vld [vmem:[#allocation7 + $0x220] sm:$0xff]
    %v385 = vld [vmem:[#allocation7 + $0x228] sm:$0xff]
    %v386 = vld [vmem:[#allocation7 + $0x230] sm:$0xff]
    %v387 = vld [vmem:[#allocation7 + $0x238] sm:$0xff]
    %v388 = vld [vmem:[#allocation7 + $0x240] sm:$0xff]
    %v389 = vld [vmem:[#allocation7 + $0x248] sm:$0xff]
    %v390 = vld [vmem:[#allocation7 + $0x250] sm:$0xff]
    %v391 = vld [vmem:[#allocation7 + $0x258] sm:$0xff]
    %v392 = vld [vmem:[#allocation7 + $0x260] sm:$0xff]
    %v393 = vld [vmem:[#allocation7 + $0x268] sm:$0xff]
    %v394 = vld [vmem:[#allocation7 + $0x270] sm:$0xff]
    %v395 = vld [vmem:[#allocation7 + $0x278] sm:$0xff]
    %v396 = vld [vmem:[#allocation7 + $0x280] sm:$0xff]
    %v397 = vld [vmem:[#allocation7 + $0x288] sm:$0xff]
    %v398 = vld [vmem:[#allocation7 + $0x290] sm:$0xff]
    %v399 = vld [vmem:[#allocation7 + $0x298] sm:$0xff]
    %v400 = vld [vmem:[#allocation7 + $0x2a0] sm:$0xff]
    %v401 = vld [vmem:[#allocation7 + $0x2a8] sm:$0xff]
    %v402 = vld [vmem:[#allocation7 + $0x2b0] sm:$0xff]
    %v403 = vld [vmem:[#allocation7 + $0x2b8] sm:$0xff]
    %v404 = vld [vmem:[#allocation7 + $0x2c0] sm:$0xff]
    %v405 = vld [vmem:[#allocation7 + $0x2c8] sm:$0xff]
    %v406 = vld [vmem:[#allocation7 + $0x2d0] sm:$0xff]
    %v407 = vld [vmem:[#allocation7 + $0x2d8] sm:$0xff]
    %v408 = vld [vmem:[#allocation7 + $0x2e0] sm:$0xff]
    %409 = vmatprep.subr.mxu0 %v362
    %410 = vmatpush1.msra.mxu0 %v361
    %411 = vmatprep.subr.mxu0 %v365
    %412 = vmatpush1.msra.mxu0 %v364
    %413 = vmatprep.subr.mxu0 %v368
    %414 = vmatpush1.msra.mxu0 %v367
    %415 = vmatprep.subr.mxu0 %v371
    %416 = vmatpush1.msra.mxu0 %v370
    %417 = vmatprep.subr.mxu0 %v374
    %418 = vmatpush1.msra.mxu0 %v373
    %419 = vmatprep.subr.mxu0 %v377
    %420 = vmatpush1.msra.mxu0 %v376
    %421 = vmatprep.subr.mxu0 %v380
    %422 = vmatpush1.msra.mxu0 %v379
    %423 = vmatprep.subr.mxu0 %v383
    %424 = vmatpush1.msra.mxu0 %v382
    %425 = vmatprep.subr.mxu0 %v386
    %426 = vmatpush1.msra.mxu0 %v385
    %427 = vmatprep.subr.mxu0 %v389
    %428 = vmatpush1.msra.mxu0 %v388
    %429 = vmatprep.subr.mxu0 %v392
    %430 = vmatpush1.msra.mxu0 %v391
    %431 = vmatprep.subr.mxu0 %v395
    %432 = vmatpush1.msra.mxu0 %v394
    %433 = vmatprep.subr.mxu0 %v398
    %434 = vmatpush1.msra.mxu0 %v397
    %435 = vmatprep.subr.mxu0 %v401
    %436 = vmatpush1.msra.mxu0 %v400
    %437 = vmatprep.subr.mxu0 %v404
    %438 = vmatpush1.msra.mxu0 %v403
    %439 = vmatprep.subr.mxu0 %v407
    %440 = vmatpush1.msra.mxu0 %v406
    %441 = vmatprep.subr.mxu0 0.0
    %442 = vmatpush1.msra.mxu0 0.0
    %443 = vmatprep.subr.mxu0 0.0
    %444 = vmatpush1.msra.mxu0 0.0
    %445 = vmatprep.subr.mxu0 0.0
    %446 = vmatpush1.msra.mxu0 0.0
    %447 = vmatprep.subr.mxu0 0.0
    %448 = vmatpush1.msra.mxu0 0.0
    %449 = vmatprep.subr.mxu0 0.0
    %450 = vmatpush1.msra.mxu0 0.0
    %451 = vmatprep.subr.mxu0 0.0
    %452 = vmatpush1.msra.mxu0 0.0
    %453 = vmatprep.subr.mxu0 0.0
    %454 = vmatpush1.msra.mxu0 0.0
    %455 = vmatprep.subr.mxu0 0.0
    %456 = vmatpush1.msra.mxu0 0.0
    %457 = vmatprep.subr.mxu0 0.0
    %458 = vmatpush1.msra.mxu0 0.0
    %459 = vmatprep.subr.mxu0 0.0
    %460 = vmatpush1.msra.mxu0 0.0
    %461 = vmatprep.subr.mxu0 0.0
    %462 = vmatpush1.msra.mxu0 0.0
    %463 = vmatprep.subr.mxu0 0.0
    %464 = vmatpush1.msra.mxu0 0.0
    %465 = vmatprep.subr.mxu0 0.0
    %466 = vmatpush1.msra.mxu0 0.0
    %467 = vmatprep.subr.mxu0 0.0
    %468 = vmatpush1.msra.mxu0 0.0
    %469 = vmatprep.subr.mxu0 0.0
    %470 = vmatpush1.msra.mxu0 0.0
    %471 = vmatprep.subr.mxu0 0.0
    %472 = vmatpush1.msra.mxu0 0.0
    %473 = vmatprep.mubr.f32.mxu0 0.0
    %474 = vmatmul.mubr.f32.gmra.mrb[0].mxu0 %v359
    %v475 = vpop.f32.mrb[0].mxu0
    %v476 = vadd.f32 0.0, %v475
    %v477 = vpop.f32.mrb[0].mxu0
    %v478 = vadd.f32 0.0, %v477
    %479 = vmatprep.mubr.f32.mxu0 0.0
    %480 = vmatmul.mubr.f32.gmra.mrb[0].mxu0 %v360
    %v481 = vpop.f32.mrb[0].mxu0
    %v482 = vadd.f32 0.0, %v481
    %v483 = vpop.f32.mrb[0].mxu0
    %v484 = vadd.f32 0.0, %v483
    %485 = vdwg.mxu0
    %486 = vmatprep.subr.mxu0 0.0
    %487 = vmatpush1.msra.mxu0 %v363
    %488 = vmatprep.subr.mxu0 0.0
    %489 = vmatpush1.msra.mxu0 %v366
    %490 = vmatprep.subr.mxu0 0.0
    %491 = vmatpush1.msra.mxu0 %v369
    %492 = vmatprep.subr.mxu0 0.0
    %493 = vmatpush1.msra.mxu0 %v372
    %494 = vmatprep.subr.mxu0 0.0
    %495 = vmatpush1.msra.mxu0 %v375
    %496 = vmatprep.subr.mxu0 0.0
    %497 = vmatpush1.msra.mxu0 %v378
    %498 = vmatprep.subr.mxu0 0.0
    %499 = vmatpush1.msra.mxu0 %v381
    %500 = vmatprep.subr.mxu0 0.0
    %501 = vmatpush1.msra.mxu0 %v384
    %502 = vmatprep.subr.mxu0 0.0
    %503 = vmatpush1.msra.mxu0 %v387
    %504 = vmatprep.subr.mxu0 0.0
    %505 = vmatpush1.msra.mxu0 %v390
    %506 = vmatprep.subr.mxu0 0.0
    %507 = vmatpush1.msra.mxu0 %v393
    %508 = vmatprep.subr.mxu0 0.0
    %509 = vmatpush1.msra.mxu0 %v396
    %510 = vmatprep.subr.mxu0 0.0
    %511 = vmatpush1.msra.mxu0 %v399
    %512 = vmatprep.subr.mxu0 0.0
    %513 = vmatpush1.msra.mxu0 %v402
    %514 = vmatprep.subr.mxu0 0.0
    %515 = vmatpush1.msra.mxu0 %v405
    %516 = vmatprep.subr.mxu0 0.0
    %517 = vmatpush1.msra.mxu0 %v408
    %518 = vmatprep.subr.mxu0 0.0
    %519 = vmatpush1.msra.mxu0 0.0
    %520 = vmatprep.subr.mxu0 0.0
    %521 = vmatpush1.msra.mxu0 0.0
    %522 = vmatprep.subr.mxu0 0.0
    %523 = vmatpush1.msra.mxu0 0.0
    %524 = vmatprep.subr.mxu0 0.0
    %525 = vmatpush1.msra.mxu0 0.0
    %526 = vmatprep.subr.mxu0 0.0
    %527 = vmatpush1.msra.mxu0 0.0
    %528 = vmatprep.subr.mxu0 0.0
    %529 = vmatpush1.msra.mxu0 0.0
    %530 = vmatprep.subr.mxu0 0.0
    %531 = vmatpush1.msra.mxu0 0.0
    %532 = vmatprep.subr.mxu0 0.0
    %533 = vmatpush1.msra.mxu0 0.0
    %534 = vmatprep.subr.mxu0 0.0
    %535 = vmatpush1.msra.mxu0 0.0
    %536 = vmatprep.subr.mxu0 0.0
    %537 = vmatpush1.msra.mxu0 0.0
    %538 = vmatprep.subr.mxu0 0.0
    %539 = vmatpush1.msra.mxu0 0.0
    %540 = vmatprep.subr.mxu0 0.0
    %541 = vmatpush1.msra.mxu0 0.0
    %542 = vmatprep.subr.mxu0 0.0
    %543 = vmatpush1.msra.mxu0 0.0
    %544 = vmatprep.subr.mxu0 0.0
    %545 = vmatpush1.msra.mxu0 0.0
    %546 = vmatprep.subr.mxu0 0.0
    %547 = vmatpush1.msra.mxu0 0.0
    %548 = vmatprep.subr.mxu0 0.0
    %549 = vmatpush1.msra.mxu0 0.0
    %550 = vmatprep.mubr.f32.mxu0 0.0
    %551 = vmatmul.mubr.f32.gmra.mrb[0].mxu0 %v359
    %v552 = vpop.f32.mrb[0].mxu0
    %v553 = vadd.f32 0.0, %v552
    %v554 = vpop.f32.mrb[0].mxu0
    %555 = vmatprep.mubr.f32.mxu0 0.0
    %556 = vmatmul.mubr.f32.gmra.mrb[0].mxu0 %v360
    %v557 = vpop.f32.mrb[0].mxu0
    %v558 = vadd.f32 0.0, %v557
    %v559 = vpop.f32.mrb[0].mxu0
    %560 = vdwg.mxu0
    %v561 = vstv %s57
    %562 = vmatprep.subr.mxu0 0.0
    %563 = vmatpush1.msra.mxu0 %v476
    %564 = vmatprep.subr.mxu0 0.0
    %565 = vmatpush1.msra.mxu0 %v482
    %566 = vmatprep.subr.mxu0 0.0
    %567 = vmatpush1.msra.mxu0 %v478
    %568 = vmatprep.subr.mxu0 0.0
    %569 = vmatpush1.msra.mxu0 %v484
    %570 = vmatprep.subr.mxu0 0.0
    %571 = vmatpush1.msra.mxu0 %v553
    %572 = vmatprep.subr.mxu0 0.0
    %573 = vmatpush1.msra.mxu0 %v558
    %574 = vmatprep.subr.mxu0 0.0
    %575 = vmatpush1.msra.mxu0 0.0
    %576 = vmatprep.subr.mxu0 0.0
    %577 = vmatpush1.msra.mxu0 0.0
    %578 = vmatprep.subr.mxu0 0.0
    %579 = vmatpush1.msra.mxu0 0.0
    %580 = vmatprep.subr.mxu0 0.0
    %581 = vmatpush1.msra.mxu0 0.0
    %582 = vmatprep.subr.mxu0 0.0
    %583 = vmatpush1.msra.mxu0 0.0
    %584 = vmatprep.subr.mxu0 0.0
    %585 = vmatpush1.msra.mxu0 0.0
    %586 = vmatprep.subr.mxu0 0.0
    %587 = vmatpush1.msra.mxu0 0.0
    %588 = vmatprep.subr.mxu0 0.0
    %589 = vmatpush1.msra.mxu0 0.0
    %590 = vmatprep.subr.mxu0 0.0
    %591 = vmatpush1.msra.mxu0 0.0
    %592 = vmatprep.subr.mxu0 0.0
    %593 = vmatpush1.msra.mxu0 0.0
    %594 = vmatprep.subr.mxu0 0.0
    %595 = vmatpush1.msra.mxu0 0.0
    %596 = vmatprep.subr.mxu0 0.0
    %597 = vmatpush1.msra.mxu0 0.0
    %598 = vmatprep.subr.mxu0 0.0
    %599 = vmatpush1.msra.mxu0 0.0
    %600 = vmatprep.subr.mxu0 0.0
    %601 = vmatpush1.msra.mxu0 0.0
    %602 = vmatprep.subr.mxu0 0.0
    %603 = vmatpush1.msra.mxu0 0.0
    %604 = vmatprep.subr.mxu0 0.0
    %605 = vmatpush1.msra.mxu0 0.0
    %606 = vmatprep.subr.mxu0 0.0
    %607 = vmatpush1.msra.mxu0 0.0
    %608 = vmatprep.subr.mxu0 0.0
    %609 = vmatpush1.msra.mxu0 0.0
    %610 = vmatprep.subr.mxu0 0.0
    %611 = vmatpush1.msra.mxu0 0.0
    %612 = vmatprep.subr.mxu0 0.0
    %613 = vmatpush1.msra.mxu0 0.0
    %614 = vmatprep.subr.mxu0 0.0
    %615 = vmatpush1.msra.mxu0 0.0
    %616 = vmatprep.subr.mxu0 0.0
    %617 = vmatpush1.msra.mxu0 0.0
    %618 = vmatprep.subr.mxu0 0.0
    %619 = vmatpush1.msra.mxu0 0.0
    %620 = vmatprep.subr.mxu0 0.0
    %621 = vmatpush1.msra.mxu0 0.0
    %622 = vmatprep.subr.mxu0 0.0
    %623 = vmatpush1.msra.mxu0 0.0
    %624 = vmatprep.subr.mxu0 0.0
    %625 = vmatpush1.msra.mxu0 0.0
    %626 = vmatprep.mubr.f32.mxu0 0.0
    %627 = vmatmul.mubr.f32.gmra.mrb[0].mxu0 %v279
    %v628 = vpop.f32.mrb[0].mxu0
    %v629 = vadd.f32 %v561, %v628
    %v630 = vpop.f32.mrb[0].mxu0
    %631 = vmatprep.mubr.f32.mxu0 0.0
    %632 = vmatmul.mubr.f32.gmra.mrb[0].mxu0 %v282
    %v633 = vpop.f32.mrb[0].mxu0
    %v634 = vadd.f32 %v561, %v633
    %v635 = vpop.f32.mrb[0].mxu0
    %636 = vdwg.mxu0
    %v637 = vmax.f32 %v629, 0.0
    %v638 = vmax.f32 %v634, 0.0
    %641 = vrot.lane.b32.xlu0 %v637, 114
    %v642 = vpop.permute.xlu0 %641
    %643 = vrot.lane.b32.xlu0 %v638, 114
    %v644 = vpop.permute.xlu0 %643
    %v647 = vmax.f32 %v637, %v642
    %v648 = vmax.f32 %v638, %v644
    %v649 = vld [vmem:[#allocation7 + $0x318] sm:$0xff]
    %v650 = vld [vmem:[#allocation7 + $0x320] sm:$0xff]
    %v651 = vld [vmem:[#allocation7 + $0x330] sm:$0x3f]
    %v652 = vld [vmem:[#allocation7 + $0x338] sm:$0x3f]
    %v653 = vld [vmem:[#allocation7 + $0x348] sm:$0xff]
    %v654 = vld [vmem:[#allocation7 + $0x350] sm:$0xff]
    %v655 = vld [vmem:[#allocation7 + $0x360] sm:$0xff]
    %v656 = vld [vmem:[#allocation7 + $0x368] sm:$0xff]
    %v657 = vld [vmem:[#allocation7 + $0x378] sm:$0xff]
    %v658 = vld [vmem:[#allocation7 + $0x390] sm:$0xff]
    %v659 = vld [vmem:[#allocation7 + $0x3a8] sm:$0xff]
    %v660 = vld [vmem:[#allocation7 + $0x3c0] sm:$0xff]
    %v661 = vld [vmem:[#allocation7 + $0x3d8] sm:$0xff]
    %v662 = vld [vmem:[#allocation7 + $0x3f0] sm:$0xff]
    %v663 = vld [vmem:[#allocation7 + $0x408] sm:$0xff]
    %v664 = vld [vmem:[#allocation7 + $0x420] sm:$0xff]
    %v665 = vld [vmem:[#allocation7 + $0x438] sm:$0xff]
    %v666 = vld [vmem:[#allocation7 + $0x450] sm:$0xff]
    %v667 = vld [vmem:[#allocation7 + $0x468] sm:$0xff]
    %v668 = vld [vmem:[#allocation7 + $0x480] sm:$0xff]
    %v669 = vld [vmem:[#allocation7 + $0x498] sm:$0xff]
    %v670 = vld [vmem:[#allocation7 + $0x4b0] sm:$0xff]
    %v671 = vld [vmem:[#allocation7 + $0x4c8] sm:$0xff]
    %v672 = vld [vmem:[#allocation7 + $0x4e0] sm:$0xff]
    %v673 = vld [vmem:[#allocation7 + $0x4f8] sm:$0xff]
    %v674 = vld [vmem:[#allocation7 + $0x510] sm:$0xff]
    %v675 = vld [vmem:[#allocation7 + $0x528] sm:$0xff]
    %v676 = vld [vmem:[#allocation7 + $0x540] sm:$0xff]
    %vm677 = vcmask 113664
    %v679 = vsel %vm677, %v647, 0
    %v682 = vsel %vm677, %v648, 0
    %vm684 = vcmask 1045504
    %v686 = vsel %vm684, %v651, 0
    %v689 = vsel %vm684, %v652, 0
    %691 = vmatprep.subr.mxu0 %v650
    %692 = vmatpush1.msra.mxu0 %v649
    %693 = vmatprep.subr.mxu0 %v689
    %694 = vmatpush1.msra.mxu0 %v686
    %695 = vmatprep.subr.mxu0 0.0
    %696 = vmatpush1.msra.mxu0 0.0
    %697 = vmatprep.subr.mxu0 0.0
    %698 = vmatpush1.msra.mxu0 0.0
    %699 = vmatprep.subr.mxu0 0.0
    %700 = vmatpush1.msra.mxu0 0.0
    %701 = vmatprep.subr.mxu0 0.0
    %702 = vmatpush1.msra.mxu0 0.0
    %703 = vmatprep.subr.mxu0 0.0
    %704 = vmatpush1.msra.mxu0 0.0
    %705 = vmatprep.subr.mxu0 0.0
    %706 = vmatpush1.msra.mxu0 0.0
    %707 = vmatprep.subr.mxu0 0.0
    %708 = vmatpush1.msra.mxu0 0.0
    %709 = vmatprep.subr.mxu0 0.0
    %710 = vmatpush1.msra.mxu0 0.0
    %711 = vmatprep.subr.mxu0 0.0
    %712 = vmatpush1.msra.mxu0 0.0
    %713 = vmatprep.subr.mxu0 0.0
    %714 = vmatpush1.msra.mxu0 0.0
    %715 = vmatprep.subr.mxu0 0.0
    %716 = vmatpush1.msra.mxu0 0.0
    %717 = vmatprep.subr.mxu0 0.0
    %718 = vmatpush1.msra.mxu0 0.0
    %719 = vmatprep.subr.mxu0 0.0
    %720 = vmatpush1.msra.mxu0 0.0
    %721 = vmatprep.subr.mxu0 0.0
    %722 = vmatpush1.msra.mxu0 0.0
    %723 = vmatprep.subr.mxu0 0.0
    %724 = vmatpush1.msra.mxu0 0.0
    %725 = vmatprep.subr.mxu0 0.0
    %726 = vmatpush1.msra.mxu0 0.0
    %727 = vmatprep.subr.mxu0 0.0
    %728 = vmatpush1.msra.mxu0 0.0
    %729 = vmatprep.subr.mxu0 0.0
    %730 = vmatpush1.msra.mxu0 0.0
    %731 = vmatprep.subr.mxu0 0.0
    %732 = vmatpush1.msra.mxu0 0.0
    %733 = vmatprep.subr.mxu0 0.0
    %734 = vmatpush1.msra.mxu0 0.0
    %735 = vmatprep.subr.mxu0 0.0
    %736 = vmatpush1.msra.mxu0 0.0
    %737 = vmatprep.subr.mxu0 0.0
    %738 = vmatpush1.msra.mxu0 0.0
    %739 = vmatprep.subr.mxu0 0.0
    %740 = vmatpush1.msra.mxu0 0.0
    %741 = vmatprep.subr.mxu0 0.0
    %742 = vmatpush1.msra.mxu0 0.0
    %743 = vmatprep.subr.mxu0 0.0
    %744 = vmatpush1.msra.mxu0 0.0
    %745 = vmatprep.subr.mxu0 0.0
    %746 = vmatpush1.msra.mxu0 0.0
    %747 = vmatprep.subr.mxu0 0.0
    %748 = vmatpush1.msra.mxu0 0.0
    %749 = vmatprep.subr.mxu0 0.0
    %750 = vmatpush1.msra.mxu0 0.0
    %751 = vmatprep.subr.mxu0 0.0
    %752 = vmatpush1.msra.mxu0 0.0
    %753 = vmatprep.subr.mxu0 0.0
    %754 = vmatpush1.msra.mxu0 0.0
    %755 = vmatprep.mubr.f32.mxu0 0.0
    %756 = vmatmul.mubr.f32.gmra.mrb[0].mxu0 %v679
    %v757 = vpop.f32.mrb[0].mxu0
    %v758 = vadd.f32 0.0, %v757
    %v759 = vpop.f32.mrb[0].mxu0
    %v760 = vadd.f32 0.0, %v759
    %761 = vmatprep.mubr.f32.mxu0 0.0
    %762 = vmatmul.mubr.f32.gmra.mrb[0].mxu0 %v682
    %v763 = vpop.f32.mrb[0].mxu0
    %v764 = vadd.f32 0.0, %v763
    %v765 = vpop.f32.mrb[0].mxu0
    %v766 = vadd.f32 0.0, %v765
    %767 = vdwg.mxu0
    %v768 = vmul.f32 %v758, %v653
    %v769 = vmul.f32 %v760, %v654
    %v770 = vmul.f32 %v764, %v655
    %v771 = vmul.f32 %v766, %v656
    %vm772 = vcmask 261120
    %v774 = vsel %vm772, %v769, 0
    %v777 = vsel %vm772, %v771, 0
    %779 = vmatprep.subr.mxu0 0.0
    %780 = vmatpush1.msra.mxu0 %v657
    %781 = vmatprep.subr.mxu0 0.0
    %782 = vmatpush1.msra.mxu0 %v658
    %783 = vmatprep.subr.mxu0 0.0
    %784 = vmatpush1.msra.mxu0 %v659
    %785 = vmatprep.subr.mxu0 0.0
    %786 = vmatpush1.msra.mxu0 %v660
    %787 = vmatprep.subr.mxu0 0.0
    %788 = vmatpush1.msra.mxu0 %v661
    %789 = vmatprep.subr.mxu0 0.0
    %790 = vmatpush1.msra.mxu0 %v662
    %791 = vmatprep.subr.mxu0 0.0
    %792 = vmatpush1.msra.mxu0 %v663
    %793 = vmatprep.subr.mxu0 0.0
    %794 = vmatpush1.msra.mxu0 %v664
    %795 = vmatprep.subr.mxu0 0.0
    %796 = vmatpush1.msra.mxu0 %v665
    %797 = vmatprep.subr.mxu0 0.0
    %798 = vmatpush1.msra.mxu0 %v666
    %799 = vmatprep.subr.mxu0 0.0
    %800 = vmatpush1.msra.mxu0 %v667
    %801 = vmatprep.subr.mxu0 0.0
    %802 = vmatpush1.msra.mxu0 %v668
    %803 = vmatprep.subr.mxu0 0.0
    %804 = vmatpush1.msra.mxu0 %v669
    %805 = vmatprep.subr.mxu0 0.0
    %806 = vmatpush1.msra.mxu0 %v670
    %807 = vmatprep.subr.mxu0 0.0
    %808 = vmatpush1.msra.mxu0 %v671
    %809 = vmatprep.subr.mxu0 0.0
    %810 = vmatpush1.msra.mxu0 %v672
    %811 = vmatprep.subr.mxu0 0.0
    %812 = vmatpush1.msra.mxu0 %v673
    %813 = vmatprep.subr.mxu0 0.0
    %814 = vmatpush1.msra.mxu0 %v674
    %815 = vmatprep.subr.mxu0 0.0
    %816 = vmatpush1.msra.mxu0 %v675
    %817 = vmatprep.subr.mxu0 0.0
    %818 = vmatpush1.msra.mxu0 %v676
    %819 = vmatprep.subr.mxu0 0.0
    %820 = vmatpush1.msra.mxu0 0.0
    %821 = vmatprep.subr.mxu0 0.0
    %822 = vmatpush1.msra.mxu0 0.0
    %823 = vmatprep.subr.mxu0 0.0
    %824 = vmatpush1.msra.mxu0 0.0
    %825 = vmatprep.subr.mxu0 0.0
    %826 = vmatpush1.msra.mxu0 0.0
    %827 = vmatprep.subr.mxu0 0.0
    %828 = vmatpush1.msra.mxu0 0.0
    %829 = vmatprep.subr.mxu0 0.0
    %830 = vmatpush1.msra.mxu0 0.0
    %831 = vmatprep.subr.mxu0 0.0
    %832 = vmatpush1.msra.mxu0 0.0
    %833 = vmatprep.subr.mxu0 0.0
    %834 = vmatpush1.msra.mxu0 0.0
    %835 = vmatprep.subr.mxu0 0.0
    %836 = vmatpush1.msra.mxu0 0.0
    %837 = vmatprep.subr.mxu0 0.0
    %838 = vmatpush1.msra.mxu0 0.0
    %839 = vmatprep.subr.mxu0 0.0
    %840 = vmatpush1.msra.mxu0 0.0
    %841 = vmatprep.subr.mxu0 0.0
    %842 = vmatpush1.msra.mxu0 0.0
    %843 = vmatprep.mubr.f32.mxu0 %v774
    %844 = vmatmul.mubr.f32.gmra.mrb[0].mxu0 %v768
    %v845 = vpop.f32.mrb[0].mxu0
    %v846 = vadd.f32 0.0, %v845
    %v847 = vpop.f32.mrb[0].mxu0
    %848 = vmatprep.mubr.f32.mxu0 %v777
    %849 = vmatmul.mubr.f32.gmra.mrb[0].mxu0 %v770
    %v850 = vpop.f32.mrb[0].mxu0
    %v851 = vadd.f32 0.0, %v850
    %v852 = vpop.f32.mrb[0].mxu0
    %853 = vdwg.mxu0
    %vm854 = vcmask 162816
    %v855 = vsel %vm854, %v846, 0.0
    %v856 = vrot.slane %v855, 4
    %v857 = vadd.f32 %v855, %v856
    %v858 = vrot.slane %v857, 2
    %v859 = vadd.f32 %v857, %v858
    %v860 = vrot.slane %v859, 1
    %v861 = vadd.f32 %v859, %v860
    %v862 = vsel %vm854, %v851, 0.0
    %v863 = vrot.slane %v862, 4
    %v864 = vadd.f32 %v862, %v863
    %v865 = vrot.slane %v864, 2
    %v866 = vadd.f32 %v864, %v865
    %v867 = vrot.slane %v866, 1
    %v868 = vadd.f32 %v866, %v867
    %vm869 = vcmask 1040384
    %v870 = vsel %vm869, %v861, %v868
    %v871 = vld [vmem:[#allocation7 + $0x5a0] ss:$0 sm:$0xff]
    %v872 = vadd.f32 %v870, %v871
    %v873 = vmax.f32 %v872, 0.0
    %v874 = vld [vmem:[#allocation7 + $0x558] sm:$0xff]
    %v875 = vld [vmem:[#allocation7 + $0x570] sm:$0xff]
    %v876 = vld [vmem:[#allocation7 + $0x588] sm:$0xf]
    %v877 = vld [vmem:[#allocation7 + $0x5a8] ss:$0 sm:$0xff]
    %v879 = vsel %vm854, %v873, 0
    %v882 = vsel %vm114, %v876, 0
    %884 = vmatprep.subr.mxu0 0.0
    %885 = vmatpush1.msra.mxu0 %v874
    %886 = vmatprep.subr.mxu0 0.0
    %887 = vmatpush1.msra.mxu0 %v875
    %888 = vmatprep.subr.mxu0 0.0
    %889 = vmatpush1.msra.mxu0 %v882
    %890 = vmatprep.subr.mxu0 0.0
    %891 = vmatpush1.msra.mxu0 0.0
    %892 = vmatprep.subr.mxu0 0.0
    %893 = vmatpush1.msra.mxu0 0.0
    %894 = vmatprep.subr.mxu0 0.0
    %895 = vmatpush1.msra.mxu0 0.0
    %896 = vmatprep.subr.mxu0 0.0
    %897 = vmatpush1.msra.mxu0 0.0
    %898 = vmatprep.subr.mxu0 0.0
    %899 = vmatpush1.msra.mxu0 0.0
    %900 = vmatprep.subr.mxu0 0.0
    %901 = vmatpush1.msra.mxu0 0.0
    %902 = vmatprep.subr.mxu0 0.0
    %903 = vmatpush1.msra.mxu0 0.0
    %904 = vmatprep.subr.mxu0 0.0
    %905 = vmatpush1.msra.mxu0 0.0
    %906 = vmatprep.subr.mxu0 0.0
    %907 = vmatpush1.msra.mxu0 0.0
    %908 = vmatprep.subr.mxu0 0.0
    %909 = vmatpush1.msra.mxu0 0.0
    %910 = vmatprep.subr.mxu0 0.0
    %911 = vmatpush1.msra.mxu0 0.0
    %912 = vmatprep.subr.mxu0 0.0
    %913 = vmatpush1.msra.mxu0 0.0
    %914 = vmatprep.subr.mxu0 0.0
    %915 = vmatpush1.msra.mxu0 0.0
    %916 = vmatprep.subr.mxu0 0.0
    %917 = vmatpush1.msra.mxu0 0.0
    %918 = vmatprep.subr.mxu0 0.0
    %919 = vmatpush1.msra.mxu0 0.0
    %920 = vmatprep.subr.mxu0 0.0
    %921 = vmatpush1.msra.mxu0 0.0
    %922 = vmatprep.subr.mxu0 0.0
    %923 = vmatpush1.msra.mxu0 0.0
    %924 = vmatprep.subr.mxu0 0.0
    %925 = vmatpush1.msra.mxu0 0.0
    %926 = vmatprep.subr.mxu0 0.0
    %927 = vmatpush1.msra.mxu0 0.0
    %928 = vmatprep.subr.mxu0 0.0
    %929 = vmatpush1.msra.mxu0 0.0
    %930 = vmatprep.subr.mxu0 0.0
    %931 = vmatpush1.msra.mxu0 0.0
    %932 = vmatprep.subr.mxu0 0.0
    %933 = vmatpush1.msra.mxu0 0.0
    %934 = vmatprep.subr.mxu0 0.0
    %935 = vmatpush1.msra.mxu0 0.0
    %936 = vmatprep.subr.mxu0 0.0
    %937 = vmatpush1.msra.mxu0 0.0
    %938 = vmatprep.subr.mxu0 0.0
    %939 = vmatpush1.msra.mxu0 0.0
    %940 = vmatprep.subr.mxu0 0.0
    %941 = vmatpush1.msra.mxu0 0.0
    %942 = vmatprep.subr.mxu0 0.0
    %943 = vmatpush1.msra.mxu0 0.0
    %944 = vmatprep.subr.mxu0 0.0
    %945 = vmatpush1.msra.mxu0 0.0
    %946 = vmatprep.subr.mxu0 0.0
    %947 = vmatpush1.msra.mxu0 0.0
    %948 = vmatprep.mubr.f32.mxu0 0.0
    %949 = vmatmul.mubr.f32.gmra.mrb[0].mxu0 %v879
    %v950 = vpop.f32.mrb[0].mxu0
    %v951 = vadd.f32 %v877, %v950
    %v952 = vpop.f32.mrb[0].mxu0
    %953 = vdwg.mxu0
    %vm954 = vcmask 50176
    %955 = vst.msk [vmem:[#allocation9] sm:$0x3] %vm954, %v951
    // Predicated region
    $region26: #{seismic_forward.1} parent=1 // pred_check
      _
    $region27: #{seismic_forward.1} parent=1 // pred_check_branch
      %957 = sbr.rel (0) target = $region29
    $region28: #{seismic_forward.1} parent=1 // pred_region
      %s959 = ssub.s32 32, 32
      %960 = vsyncadd [#allocation4], %s959
      %s962 = sshll.u32 [#allocation9], 4
      %s963 = int_to_ptr.vmem [resolvable:$true] %s962
      %965 = dma.vmem_to_hbm [thread:$0]  %s963, 32, %s3, [#allocation4]
    $region29: #{seismic_forward.1} parent=1 // pred_fallthru
      _
    // Predicated region
    $region30: #{seismic_forward.1} parent=1 // pred_check
      _
    $region31: #{seismic_forward.1} parent=1 // pred_check_branch
      %967 = sbr.rel (0) target = $region33
    $region32: #{seismic_forward.1} parent=1 // pred_region
      %968 = dma.done [#allocation4], 32
    $region33: #{seismic_forward.1} parent=1 // pred_fallthru
      _
    %969 = vsyncpa [#allocation3], 1
    %970 = vsyncpa [#allocation8], 1
    %971 = vsyncpa [#allocation4], 1
    %972 = vsyncpa [#allocation5], 1

</llo_original>
